<compile_context>
chip_gen: v5e
topology: v5e:2x2
jax: 0.10.0
libtpu: 0.0.40
codegen_flags: <defaults>
</compile_context>

<pallas_src>
import functools
from typing import NamedTuple

import jax
import jax.numpy as jnp
from jax.experimental import pallas as pl
from jax.experimental.pallas import tpu as pltpu


def _round_up(x, m):
    return ((x + m - 1) // m) * m


class IOMatchDims(NamedTuple):
    F: int        # backbone feature width
    NC: int       # num_classes
    P: int        # proj_size
    K_pad: int    # flattened input dim rounded up to 128
    F_p: int      # F rounded up to 128 (lane aligned)
    NC_p: int     # NC rounded up to 128
    P_p: int      # P rounded up to 128
    OPEN_p: int   # NC+1 rounded up to 128
    MB_p: int     # 2*NC rounded up to 128


# ---------------------------------------------------------------------------
# One-time parameter packing (padding, head fusion, bf16 casts).
# ---------------------------------------------------------------------------
def pack_iomatch_params(params):
    din, F = params["w_feat"].shape
    NC = params["w_fc"].shape[1]
    P = params["w2"].shape[1]

    K_pad = _round_up(din, 128)
    F_p = _round_up(F, 128)
    NC_p = _round_up(NC, 128)
    P_p = _round_up(P, 128)
    OPEN_p = _round_up(NC + 1, 128)
    MB_p = _round_up(2 * NC, 128)

    def pad2(a, rows, cols):
        return jnp.pad(a, ((0, rows - a.shape[0]), (0, cols - a.shape[1])))

    w_feat = pad2(params["w_feat"], K_pad, F_p).astype(jnp.bfloat16)
    b_feat = pad2(params["b_feat"], 1, F_p)

    # fused head #1: [mlp_proj[0] | backbone fc], each segment 128-lane aligned
    w_h1 = jnp.concatenate(
        [pad2(params["w1"], F_p, F_p), pad2(params["w_fc"], F_p, NC_p)],
        axis=1).astype(jnp.bfloat16)
    b_h1 = jnp.concatenate(
        [pad2(params["b1"], 1, F_p), pad2(params["b_fc"], 1, NC_p)], axis=1)

    w2 = pad2(params["w2"], F_p, P_p).astype(jnp.bfloat16)
    b2 = pad2(params["b2"], 1, P_p)

    # fused head #2: [openset_classifier | mb_classifiers] (mb has no bias)
    w_h2 = jnp.concatenate(
        [pad2(params["w_open"], P_p, OPEN_p), pad2(params["w_mb"], P_p, MB_p)],
        axis=1).astype(jnp.bfloat16)
    b_h2 = jnp.concatenate(
        [pad2(params["b_open"], 1, OPEN_p), jnp.zeros((1, MB_p), jnp.float32)],
        axis=1)

    packed = {"w_feat": w_feat, "b_feat": b_feat,
              "w_h1": w_h1, "b_h1": b_h1,
              "w2": w2, "b2": b2,
              "w_h2": w_h2, "b_h2": b_h2}
    dims = IOMatchDims(F, NC, P, K_pad, F_p, NC_p, P_p, OPEN_p, MB_p)
    return packed, dims


# ---------------------------------------------------------------------------
# Kernels
# ---------------------------------------------------------------------------
def _heads_epilogue(d, feat32, wh1_ref, bh1_ref, w2_ref, b2_ref,
                    wh2_ref, bh2_ref, out_ref):
    """feat32: (TILE_B, F_p) f32, already bias+ReLU'd (padded cols are zero).

    Writes [feat | logits | feat_proj | logits_open+logits_mb] directly into
    128-aligned static sub-slices of out_ref (unmasked stores, no concat).
    """
    out_ref[:, 0:d.F_p] = feat32
    feat_bf = feat32.astype(jnp.bfloat16)

    # fused [mlp_proj[0] | backbone fc]; split at F_p is lane-aligned.
    h1 = jnp.dot(feat_bf, wh1_ref[...],
                 preferred_element_type=jnp.float32) + bh1_ref[...]
    out_ref[:, d.F_p:d.F_p + d.NC_p] = h1[:, d.F_p:]
    hidden = jnp.maximum(h1[:, :d.F_p], 0.0).astype(jnp.bfloat16)

    # mlp_proj[2]
    proj = jnp.dot(hidden, w2_ref[...],
                   preferred_element_type=jnp.float32) + b2_ref[...]
    off = d.F_p + d.NC_p
    out_ref[:, off:off + d.P_p] = proj

    # fused [openset_classifier | mb_classifiers] (mb bias slots are zero).
    h2 = jnp.dot(proj.astype(jnp.bfloat16), wh2_ref[...],
                 preferred_element_type=jnp.float32) + bh2_ref[...]
    off += d.P_p
    out_ref[:, off:off + d.OPEN_p + d.MB_p] = h2

    # TODO(synk): use_rot=True branch (rot_classifier: Linear(F, 4, bias=False))
    # would be one more small matmul on feat; module default is use_rot=False.


def _iomatch_kernel_resident(d,
                             x_ref, wfeat_ref, bfeat_ref,
                             wh1_ref, bh1_ref, w2_ref, b2_ref,
                             wh2_ref, bh2_ref,
                             out_ref):
    # x arrives f32; per-tile VPU cast to bf16 (free in a mem-bound regime).
    acc = jnp.dot(x_ref[...].astype(jnp.bfloat16), wfeat_ref[...],
                  preferred_element_type=jnp.float32)
    feat = jnp.maximum(acc + bfeat_ref[...], 0.0)
    _heads_epilogue(d, feat, wh1_ref, bh1_ref, w2_ref, b2_ref,
                    wh2_ref, bh2_ref, out_ref)


def _iomatch_kernel_ktiled(d,
                           x_ref, wfeat_ref, bfeat_ref,
                           wh1_ref, bh1_ref, w2_ref, b2_ref,
                           wh2_ref, bh2_ref,
                           out_ref, acc_ref):
    k = pl.program_id(1)

    @pl.when(k == 0)
    def _():
        acc_ref[...] = jnp.zeros_like(acc_ref)

    acc_ref[...] += jnp.dot(x_ref[...].astype(jnp.bfloat16), wfeat_ref[...],
                            preferred_element_type=jnp.float32)

    @pl.when(k == pl.num_programs(1) - 1)
    def _():
        # Reuse acc_ref as the feat buffer to keep epilogue vreg pressure low.
        acc_ref[...] = jnp.maximum(acc_ref[...] + bfeat_ref[...], 0.0)
        _heads_epilogue(d, acc_ref[...], wh1_ref, bh1_ref, w2_ref, b2_ref,
                        wh2_ref, bh2_ref, out_ref)


# ---------------------------------------------------------------------------
# Tiling / budget helpers
# ---------------------------------------------------------------------------
def _vmem_budget_bytes():
    # ~75% of physical VMEM, capped at 96 MiB (v5e/v6e: 128 MiB, v7x: 64 MiB).
    try:
        cap = int(pltpu.get_tpu_info().vmem_capacity_bytes)
    except Exception:
        cap = 64 * 1024 * 1024
    return min(96 * 1024 * 1024, (cap * 3) // 4)


def _pick_batch_tiling(B):
    """Pick (TILE_B, B_pad).  Keep >=2 batch tiles when B allows it so the
    'parallel' batch axis shards across both TensorCores on v7x."""
    if B <= 8:
        return B, B                       # full-dim block, no padding needed
    B8 = _round_up(B, 8)
    tile = min(256, B8)
    if B8 // tile < 2 and B8 >= 16:       # force nb >= 2 for megacore
        tile = max(8, _round_up(B8 // 2, 8))
    return tile, _round_up(B, tile)


def _pick_tile_k(K_pad, TILE_B, F_p, fixed_bytes, budget):
    """Largest TILE_K (multiple of 128, divides K_pad, <= 2048) whose
    double-buffered x + w_feat slabs plus fixed VMEM fit the budget."""
    for cand in range(min(2048, K_pad), 0, -128):
        if K_pad % cand:
            continue
        need = (fixed_bytes
                + TILE_B * F_p * 4            # f32 accumulator
                + 2 * TILE_B * cand * 4       # x tile (f32, double-buffered)
                + 2 * cand * F_p * 2)         # w_feat slab (bf16, double-buffered)
        if need <= budget:
            return cand
    return 128


# ---------------------------------------------------------------------------
# Forward wrapper
# ---------------------------------------------------------------------------
def iomatch_forward(x_nchw, packed, *, dims, force_ktiled=False):
    d = dims
    B = x_nchw.shape[0]
    x_flat = x_nchw.reshape(B, -1)
    din = x_flat.shape[1]

    TILE_B, B_pad = _pick_batch_tiling(B)
    nb = B_pad // TILE_B
    OUT_PAD = d.F_p + d.NC_p + d.P_p + d.OPEN_p + d.MB_p

    # Pad x only when actually required; it stays f32 (bf16 cast in-kernel).
    if B_pad != B or d.K_pad != din:
        x_flat = jnp.pad(x_flat, ((0, B_pad - B), (0, d.K_pad - din)))
    x_bytes = jnp.dtype(x_flat.dtype).itemsize

    # ---- per-chip VMEM budget & K strategy ----
    budget = _vmem_budget_bytes()
    head_param_bytes = 2 * (d.F_p * (d.F_p + d.NC_p) + d.F_p * d.P_p
                            + d.P_p * (d.OPEN_p + d.MB_p))
    bias_param_bytes = 4 * (d.F_p + (d.F_p + d.NC_p) + d.P_p
                            + (d.OPEN_p + d.MB_p))
    fixed_bytes = (2 * head_param_bytes + 2 * bias_param_bytes
                   + 2 * TILE_B * OUT_PAD * 4)

    resident_bytes = (fixed_bytes
                      + 2 * TILE_B * d.K_pad * x_bytes   # x tile, double-buffered
                      + 2 * d.K_pad * d.F_p * 2)         # w_feat (bf16)
    use_resident = (not force_ktiled) and resident_bytes <= budget

    if use_resident:
        grid = (nb,)
        nk = 1

        def const(shape):
            return pl.BlockSpec(shape, lambda i: (0, 0))

        in_specs = [
            pl.BlockSpec((TILE_B, d.K_pad), lambda i: (i, 0)),       # x
            const((d.K_pad, d.F_p)),                                 # w_feat
            const((1, d.F_p)),                                       # b_feat
            const((d.F_p, d.F_p + d.NC_p)),                          # fused head1 W
            const((1, d.F_p + d.NC_p)),                              # fused head1 b
            const((d.F_p, d.P_p)),                                   # mlp_proj[2] W
            const((1, d.P_p)),                                       # mlp_proj[2] b
            const((d.P_p, d.OPEN_p + d.MB_p)),                       # fused head2 W
            const((1, d.OPEN_p + d.MB_p)),                           # fused head2 b
        ]
        out_spec = pl.BlockSpec((TILE_B, OUT_PAD), lambda i: (i, 0))
        scratch = []
        kernel = functools.partial(_iomatch_kernel_resident, d)
        dim_sem = ("parallel",)
    else:
        TILE_K = _pick_tile_k(d.K_pad, TILE_B, d.F_p, fixed_bytes, budget)
        nk = d.K_pad // TILE_K
        grid = (nb, nk)

        def const(shape):
            return pl.BlockSpec(shape, lambda i, k: (0, 0))

        in_specs = [
            pl.BlockSpec((TILE_B, TILE_K), lambda i, k: (i, k)),     # x tile
            pl.BlockSpec((TILE_K, d.F_p), lambda i, k: (k, 0)),      # w_feat K-slab
            const((1, d.F_p)),
            const((d.F_p, d.F_p + d.NC_p)),
            const((1, d.F_p + d.NC_p)),
            const((d.F_p, d.P_p)),
            const((1, d.P_p)),
            const((d.P_p, d.OPEN_p + d.MB_p)),
            const((1, d.OPEN_p + d.MB_p)),
        ]
        out_spec = pl.BlockSpec((TILE_B, OUT_PAD), lambda i, k: (i, 0))
        scratch = [pltpu.VMEM((TILE_B, d.F_p), jnp.float32)]
        kernel = functools.partial(_iomatch_kernel_ktiled, d)
        dim_sem = ("parallel", "arbitrary")

    flops = 2 * B_pad * (d.K_pad * d.F_p + d.F_p * (d.F_p + d.NC_p)
                         + d.F_p * d.P_p + d.P_p * (d.OPEN_p + d.MB_p))
    wfeat_passes = 1 if use_resident else nb
    bytes_accessed = (B_pad * d.K_pad * x_bytes          # x read once
                      + wfeat_passes * d.K_pad * d.F_p * 2
                      + head_param_bytes + bias_param_bytes
                      + B_pad * OUT_PAD * 4)             # output slab write

    grid_spec = pltpu.PrefetchScalarGridSpec(
        num_scalar_prefetch=0, grid=grid,
        in_specs=in_specs, out_specs=out_spec, scratch_shapes=scratch)

    slab = pl.pallas_call(
        kernel,
        out_shape=jax.ShapeDtypeStruct((B_pad, OUT_PAD), jnp.float32),
        grid_spec=grid_spec,
        compiler_params=pltpu.CompilerParams(
            dimension_semantics=dim_sem,
            vmem_limit_bytes=int(budget)),
        cost_estimate=pl.CostEstimate(
            flops=flops, transcendentals=0, bytes_accessed=bytes_accessed),
    )(x_flat, packed["w_feat"], packed["b_feat"],
      packed["w_h1"], packed["b_h1"],
      packed["w2"], packed["b2"],
      packed["w_h2"], packed["b_h2"])

    off_logits = d.F_p
    off_proj = off_logits + d.NC_p
    off_open = off_proj + d.P_p
    off_mb = off_open + d.OPEN_p
    return {
        "feat": slab[:B, :d.F],
        "logits": slab[:B, off_logits:off_logits + d.NC],
        "feat_proj": slab[:B, off_proj:off_proj + d.P],
        "logits_open": slab[:B, off_open:off_open + d.NC + 1],
        "logits_mb": slab[:B, off_mb:off_mb + 2 * d.NC],
    }


# ---------------------------------------------------------------------------
# Reference / init / test
# ---------------------------------------------------------------------------
def iomatch_reference(x_nchw, params):
    """Pure-JAX f32 reference of the PyTorch forward (correctness check)."""
    B = x_nchw.shape[0]
    x = x_nchw.reshape(B, -1).astype(jnp.float32)
    feat = jnp.maximum(x @ params["w_feat"] + params["b_feat"], 0.0)
    logits = feat @ params["w_fc"] + params["b_fc"]
    h = jnp.maximum(feat @ params["w1"] + params["b1"], 0.0)
    proj = h @ params["w2"] + params["b2"]
    logits_open = proj @ params["w_open"] + params["b_open"]
    logits_mb = proj @ params["w_mb"]
    return {"feat": feat, "feat_proj": proj, "logits": logits,
            "logits_open": logits_open, "logits_mb": logits_mb}


def _xavier_normal(key, fan_in, fan_out):
    # nn.init.xavier_normal_: std = sqrt(2 / (fan_in + fan_out)); stored (in, out).
    std = (2.0 / (fan_in + fan_out)) ** 0.5
    return jax.random.normal(key, (fan_in, fan_out), dtype=jnp.float32) * std


def init_params(key, din, feat_planes, num_classes, proj_size):
    ks = jax.random.split(key, 8)
    p = {}
    # synthetic backbone (only_feat Linear+ReLU, only_fc Linear)
    p["w_feat"] = _xavier_normal(ks[0], din, feat_planes)
    p["b_feat"] = jnp.zeros((1, feat_planes), jnp.float32)
    p["w_fc"] = _xavier_normal(ks[1], feat_planes, num_classes)
    p["b_fc"] = jnp.zeros((1, num_classes), jnp.float32)
    # mlp_proj: Linear(F,F) -> ReLU -> Linear(F, proj_size)
    p["w1"] = _xavier_normal(ks[2], feat_planes, feat_planes)
    p["b1"] = jnp.zeros((1, feat_planes), jnp.float32)
    p["w2"] = _xavier_normal(ks[3], feat_planes, proj_size)
    p["b2"] = jnp.zeros((1, proj_size), jnp.float32)
    # openset_classifier: Linear(proj_size, num_classes+1), xavier, zero bias
    p["w_open"] = _xavier_normal(ks[4], proj_size, num_classes + 1)
    p["b_open"] = jnp.zeros((1, num_classes + 1), jnp.float32)
    # mb_classifiers: Linear(proj_size, 2*num_classes, bias=False), xavier
    p["w_mb"] = _xavier_normal(ks[5], proj_size, 2 * num_classes)
    return p


def _check_close(out, ref, *, rtol, atol):
    for name in ("feat", "feat_proj", "logits", "logits_open", "logits_mb"):
        ok = bool(jnp.allclose(out[name], ref[name], rtol=rtol, atol=atol))
        assert ok, (name, float(jnp.max(jnp.abs(out[name] - ref[name]))))


if __name__ == "__main__":
    # ---- primary check: small shapes consistent with the module defaults ----
    B, C, H, W = 2, 4, 16, 16
    feat_planes, num_classes, proj_size = 32, 6, 16
    din = C * H * W

    key = jax.random.PRNGKey(0)
    kx, kp, kx2, kp2 = jax.random.split(key, 4)
    x = jax.random.normal(kx, (B, C, H, W), dtype=jnp.float32)
    params = init_params(kp, din, feat_planes, num_classes, proj_size)

    packed, dims = pack_iomatch_params(params)     # one-time weight packing
    fwd = jax.jit(functools.partial(iomatch_forward, dims=dims))
    out = jax.tree_util.tree_map(jax.block_until_ready, fwd(x, packed))

    assert out["feat"].shape == (B, feat_planes)
    assert out["feat_proj"].shape == (B, proj_size)
    assert out["logits"].shape == (B, num_classes)
    assert out["logits_open"].shape == (B, num_classes + 1)
    assert out["logits_mb"].shape == (B, 2 * num_classes)
    _check_close(out, iomatch_reference(x, params), rtol=0.05, atol=0.05)

    # ---- secondary check: non-128-multiple din, multi-batch-tile, both paths ----
    B2, C2, H2, W2 = 32, 3, 28, 28
    F2, NC2, P2 = 256, 10, 128
    din2 = C2 * H2 * W2
    x2 = jax.random.normal(kx2, (B2, C2, H2, W2), dtype=jnp.float32)
    params2 = init_params(kp2, din2, F2, NC2, P2)
    packed2, dims2 = pack_iomatch_params(params2)
    ref2 = iomatch_reference(x2, params2)

    out2 = jax.tree_util.tree_map(
        jax.block_until_ready,
        iomatch_forward(x2, packed2, dims=dims2))                      # resident
    _check_close(out2, ref2, rtol=0.08, atol=0.08)

    out3 = jax.tree_util.tree_map(
        jax.block_until_ready,
        iomatch_forward(x2, packed2, dims=dims2, force_ktiled=True))   # K-tiled
    _check_close(out3, ref2, rtol=0.08, atol=0.08)

    print("KERNEL_OK")
</pallas_src>

<mosaic_0001>
module attributes {stable_mosaic.version = 11 : i64} {
  func.func @_iomatch_kernel_resident(%arg0: i32, %arg1: memref<2x1024xf32, #tpu.memory_space<vmem>>, %arg2: memref<1024x128xbf16, #tpu.memory_space<vmem>>, %arg3: memref<1x128xf32, #tpu.memory_space<vmem>>, %arg4: memref<128x256xbf16, #tpu.memory_space<vmem>>, %arg5: memref<1x256xf32, #tpu.memory_space<vmem>>, %arg6: memref<128x128xbf16, #tpu.memory_space<vmem>>, %arg7: memref<1x128xf32, #tpu.memory_space<vmem>>, %arg8: memref<128x256xbf16, #tpu.memory_space<vmem>>, %arg9: memref<1x256xf32, #tpu.memory_space<vmem>>, %arg10: memref<2x640xf32, #tpu.memory_space<vmem>>) attributes {dimension_semantics = [#tpu.dimension_semantics<parallel>], iteration_bounds = array<i64: 1>, scalar_prefetch = 0 : i64, scratch_operands = 0 : i64, tpu.core_type = #tpu.core_type<tc>, window_params = [{transform_indices = @transform_0, window_bounds = array<i64: 2, 1024>}, {pipeline_mode = #tpu.pipeline_mode<synchronous>, transform_indices = @transform_1, window_bounds = array<i64: 1024, 128>}, {pipeline_mode = #tpu.pipeline_mode<synchronous>, transform_indices = @transform_2, window_bounds = array<i64: 1, 128>}, {pipeline_mode = #tpu.pipeline_mode<synchronous>, transform_indices = @transform_3, window_bounds = array<i64: 128, 256>}, {pipeline_mode = #tpu.pipeline_mode<synchronous>, transform_indices = @transform_4, window_bounds = array<i64: 1, 256>}, {pipeline_mode = #tpu.pipeline_mode<synchronous>, transform_indices = @transform_5, window_bounds = array<i64: 128, 128>}, {pipeline_mode = #tpu.pipeline_mode<synchronous>, transform_indices = @transform_6, window_bounds = array<i64: 1, 128>}, {pipeline_mode = #tpu.pipeline_mode<synchronous>, transform_indices = @transform_7, window_bounds = array<i64: 128, 256>}, {pipeline_mode = #tpu.pipeline_mode<synchronous>, transform_indices = @transform_8, window_bounds = array<i64: 1, 256>}, {transform_indices = @transform_9, window_bounds = array<i64: 2, 640>}]} {
    %c0 = arith.constant 0 : index
    %c0_0 = arith.constant 0 : index
    %0 = vector.load %arg1[%c0, %c0_0] : memref<2x1024xf32, #tpu.memory_space<vmem>>, vector<2x1024xf32>
    %1 = arith.truncf %0 : vector<2x1024xf32> to vector<2x1024xbf16>
    %c0_1 = arith.constant 0 : index
    %c0_2 = arith.constant 0 : index
    %2 = vector.load %arg2[%c0_1, %c0_2] : memref<1024x128xbf16, #tpu.memory_space<vmem>>, vector<1024x128xbf16>
    %cst = arith.constant dense<0.000000e+00> : vector<2x128xf32>
    %3 = tpu.matmul %1, %2, %cst {dimension_numbers = #tpu.dot_dimension_numbers<[1], [0], [0], [1], [0, 0, 1, 1], [], []>} : vector<2x1024xbf16>, vector<1024x128xbf16>, vector<2x128xf32> -> vector<2x128xf32>
    %c0_3 = arith.constant 0 : index
    %c0_4 = arith.constant 0 : index
    %4 = vector.load %arg3[%c0_3, %c0_4] : memref<1x128xf32, #tpu.memory_space<vmem>>, vector<1x128xf32>
    %5 = vector.broadcast %4 : vector<1x128xf32> to vector<2x128xf32>
    %6 = arith.addf %3, %5 : vector<2x128xf32>
    %cst_5 = arith.constant 0.000000e+00 : f32
    %7 = vector.broadcast %cst_5 : f32 to vector<2x128xf32>
    %8 = arith.maximumf %6, %7 : vector<2x128xf32>
    %c0_6 = arith.constant 0 : index
    %c0_7 = arith.constant 0 : index
    %9 = vector.load %arg10[%c0_6, %c0_7] : memref<2x640xf32, #tpu.memory_space<vmem>>, vector<2x128xf32>
    tpu.vector_store %arg10[%c0_6, %c0_7], %8 {strides = array<i32>} : memref<2x640xf32, #tpu.memory_space<vmem>>, vector<2x128xf32>,
    %10 = arith.truncf %8 : vector<2x128xf32> to vector<2x128xbf16>
    %c0_8 = arith.constant 0 : index
    %c0_9 = arith.constant 0 : index
    %11 = vector.load %arg4[%c0_8, %c0_9] : memref<128x256xbf16, #tpu.memory_space<vmem>>, vector<128x256xbf16>
    %cst_10 = arith.constant dense<0.000000e+00> : vector<2x256xf32>
    %12 = tpu.matmul %10, %11, %cst_10 {dimension_numbers = #tpu.dot_dimension_numbers<[1], [0], [0], [1], [0, 0, 1, 1], [], []>} : vector<2x128xbf16>, vector<128x256xbf16>, vector<2x256xf32> -> vector<2x256xf32>
    %c0_11 = arith.constant 0 : index
    %c0_12 = arith.constant 0 : index
    %13 = vector.load %arg5[%c0_11, %c0_12] : memref<1x256xf32, #tpu.memory_space<vmem>>, vector<1x256xf32>
    %14 = vector.broadcast %13 : vector<1x256xf32> to vector<2x256xf32>
    %15 = arith.addf %12, %14 : vector<2x256xf32>
    %16 = vector.extract_strided_slice %15 {offsets = [0, 128], sizes = [2, 128], strides = [1, 1]} : vector<2x256xf32> to vector<2x128xf32>
    %c0_13 = arith.constant 0 : index
    %c128 = arith.constant 128 : index
    %17 = vector.load %arg10[%c0_13, %c128] : memref<2x640xf32, #tpu.memory_space<vmem>>, vector<2x128xf32>
    tpu.vector_store %arg10[%c0_13, %c128], %16 {strides = array<i32>} : memref<2x640xf32, #tpu.memory_space<vmem>>, vector<2x128xf32>,
    %18 = vector.extract_strided_slice %15 {offsets = [0, 0], sizes = [2, 128], strides = [1, 1]} : vector<2x256xf32> to vector<2x128xf32>
    %cst_14 = arith.constant 0.000000e+00 : f32
    %19 = vector.broadcast %cst_14 : f32 to vector<2x128xf32>
    %20 = arith.maximumf %18, %19 : vector<2x128xf32>
    %21 = arith.truncf %20 : vector<2x128xf32> to vector<2x128xbf16>
    %c0_15 = arith.constant 0 : index
    %c0_16 = arith.constant 0 : index
    %22 = vector.load %arg6[%c0_15, %c0_16] : memref<128x128xbf16, #tpu.memory_space<vmem>>, vector<128x128xbf16>
    %cst_17 = arith.constant dense<0.000000e+00> : vector<2x128xf32>
    %23 = tpu.matmul %21, %22, %cst_17 {dimension_numbers = #tpu.dot_dimension_numbers<[1], [0], [0], [1], [0, 0, 1, 1], [], []>} : vector<2x128xbf16>, vector<128x128xbf16>, vector<2x128xf32> -> vector<2x128xf32>
    %c0_18 = arith.constant 0 : index
    %c0_19 = arith.constant 0 : index
    %24 = vector.load %arg7[%c0_18, %c0_19] : memref<1x128xf32, #tpu.memory_space<vmem>>, vector<1x128xf32>
    %25 = vector.broadcast %24 : vector<1x128xf32> to vector<2x128xf32>
    %26 = arith.addf %23, %25 : vector<2x128xf32>
    %c0_20 = arith.constant 0 : index
    %c256 = arith.constant 256 : index
    %27 = vector.load %arg10[%c0_20, %c256] : memref<2x640xf32, #tpu.memory_space<vmem>>, vector<2x128xf32>
    tpu.vector_store %arg10[%c0_20, %c256], %26 {strides = array<i32>} : memref<2x640xf32, #tpu.memory_space<vmem>>, vector<2x128xf32>,
    %28 = arith.truncf %26 : vector<2x128xf32> to vector<2x128xbf16>
    %c0_21 = arith.constant 0 : index
    %c0_22 = arith.constant 0 : index
    %29 = vector.load %arg8[%c0_21, %c0_22] : memref<128x256xbf16, #tpu.memory_space<vmem>>, vector<128x256xbf16>
    %cst_23 = arith.constant dense<0.000000e+00> : vector<2x256xf32>
    %30 = tpu.matmul %28, %29, %cst_23 {dimension_numbers = #tpu.dot_dimension_numbers<[1], [0], [0], [1], [0, 0, 1, 1], [], []>} : vector<2x128xbf16>, vector<128x256xbf16>, vector<2x256xf32> -> vector<2x256xf32>
    %c0_24 = arith.constant 0 : index
    %c0_25 = arith.constant 0 : index
    %31 = vector.load %arg9[%c0_24, %c0_25] : memref<1x256xf32, #tpu.memory_space<vmem>>, vector<1x256xf32>
    %32 = vector.broadcast %31 : vector<1x256xf32> to vector<2x256xf32>
    %33 = arith.addf %30, %32 : vector<2x256xf32>
    %c0_26 = arith.constant 0 : index
    %c384 = arith.constant 384 : index
    %34 = vector.load %arg10[%c0_26, %c384] : memref<2x640xf32, #tpu.memory_space<vmem>>, vector<2x256xf32>
    tpu.vector_store %arg10[%c0_26, %c384], %33 {strides = array<i32>} : memref<2x640xf32, #tpu.memory_space<vmem>>, vector<2x256xf32>,
    return
  }
  func.func @transform_0(%arg0: i32) -> (i32, i32) {
    %c0_i32 = arith.constant 0 : i32
    %c0_i32_0 = arith.constant 0 : i32
    return %arg0, %c0_i32 : i32, i32
  }
  func.func @transform_1(%arg0: i32) -> (i32, i32) {
    %c0_i32 = arith.constant 0 : i32
    %c0_i32_0 = arith.constant 0 : i32
    %c0_i32_1 = arith.constant 0 : i32
    return %c0_i32, %c0_i32_0 : i32, i32
  }
  func.func @transform_2(%arg0: i32) -> (i32, i32) {
    %c0_i32 = arith.constant 0 : i32
    %c0_i32_0 = arith.constant 0 : i32
    %c0_i32_1 = arith.constant 0 : i32
    return %c0_i32, %c0_i32_0 : i32, i32
  }
  func.func @transform_3(%arg0: i32) -> (i32, i32) {
    %c0_i32 = arith.constant 0 : i32
    %c0_i32_0 = arith.constant 0 : i32
    %c0_i32_1 = arith.constant 0 : i32
    return %c0_i32, %c0_i32_0 : i32, i32
  }
  func.func @transform_4(%arg0: i32) -> (i32, i32) {
    %c0_i32 = arith.constant 0 : i32
    %c0_i32_0 = arith.constant 0 : i32
    %c0_i32_1 = arith.constant 0 : i32
    return %c0_i32, %c0_i32_0 : i32, i32
  }
  func.func @transform_5(%arg0: i32) -> (i32, i32) {
    %c0_i32 = arith.constant 0 : i32
    %c0_i32_0 = arith.constant 0 : i32
    %c0_i32_1 = arith.constant 0 : i32
    return %c0_i32, %c0_i32_0 : i32, i32
  }
  func.func @transform_6(%arg0: i32) -> (i32, i32) {
    %c0_i32 = arith.constant 0 : i32
    %c0_i32_0 = arith.constant 0 : i32
    %c0_i32_1 = arith.constant 0 : i32
    return %c0_i32, %c0_i32_0 : i32, i32
  }
  func.func @transform_7(%arg0: i32) -> (i32, i32) {
    %c0_i32 = arith.constant 0 : i32
    %c0_i32_0 = arith.constant 0 : i32
    %c0_i32_1 = arith.constant 0 : i32
    return %c0_i32, %c0_i32_0 : i32, i32
  }
  func.func @transform_8(%arg0: i32) -> (i32, i32) {
    %c0_i32 = arith.constant 0 : i32
    %c0_i32_0 = arith.constant 0 : i32
    %c0_i32_1 = arith.constant 0 : i32
    return %c0_i32, %c0_i32_0 : i32, i32
  }
  func.func @transform_9(%arg0: i32) -> (i32, i32) {
    %c0_i32 = arith.constant 0 : i32
    %c0_i32_0 = arith.constant 0 : i32
    return %arg0, %c0_i32 : i32, i32
  }
}

</mosaic_0001>

<llo_original>
// kernel: iomatch_forward.1
$region0: #{iomatch_forward.1}
  #allocation0 [shape = 'u32[]', space=smem, size = 0x4, offset = 0x4, fixed_abs, tag = 'smem constant byte address 0x4 - core index']
  #allocation1 [shape = 'u32[72,128]{1,0:T(1,128)}', space=vmem, size = 0x9000, scoped, tag = 'internal scratch']
  %s0 = inlined_call_operand.vmem [shape: f32[2,1024], index: 0, kind: input, shape index: {}]
  %s1 = inlined_call_operand.hbm [shape: bf16[1024,128], index: 1, kind: input, shape index: {}]
  %s2 = inlined_call_operand.vmem [shape: f32[1,128], index: 2, kind: input, shape index: {}]
  %s3 = inlined_call_operand.vmem [shape: bf16[128,256], index: 3, kind: input, shape index: {}]
  %s4 = inlined_call_operand.vmem [shape: f32[1,256], index: 4, kind: input, shape index: {}]
  %s5 = inlined_call_operand.hbm [shape: bf16[128,128], index: 5, kind: input, shape index: {}]
  %s6 = inlined_call_operand.vmem [shape: f32[1,128], index: 6, kind: input, shape index: {}]
  %s7 = inlined_call_operand.hbm [shape: bf16[128,256], index: 7, kind: input, shape index: {}]
  %s8 = inlined_call_operand.vmem [shape: f32[1,256], index: 8, kind: input, shape index: {}]
  %s9 = inlined_call_operand.vmem [shape: f32[2,640], index: 9, kind: output, shape index: {}]
  %s10 = sld [smem:[#allocation0]]
  $region58: #{iomatch_forward.1} parent=0
    _
  %s12 = ssub.s32 1, %s10
  %s13 = scalar_select 0, %s12, %s10
  $region1: #{iomatch_forward.1} parent=0
    #allocation2 [shape = 'u8[262144]{0}', space=vmem, size = 0x40000, scoped, tag = 'input window, operand 1, single buffered']
    #allocation3 [shape = 's32[1]{0}', space=sflag, size = 0x4, scoped, tag = 'scoped memory for iomatch_forward.1']
    #allocation4 [shape = 'u8[32768]{0}', space=vmem, size = 0x8000, scoped, tag = 'input window, operand 5, single buffered']
    #allocation5 [shape = 's32[1]{0}', space=sflag, size = 0x4, scoped, tag = 'scoped memory for iomatch_forward.1']
    #allocation6 [shape = 'u8[65536]{0}', space=vmem, size = 0x10000, scoped, tag = 'input window, operand 7, single buffered']
    %14 = vsyncpa [#allocation3], 0
    %15 = vsyncpa [#allocation5], 0
    // Predicated region
    $region2: #{iomatch_forward.1} parent=1 // pred_check
      _
    $region3: #{iomatch_forward.1} parent=1 // pred_check_branch
      %17 = sbr.rel (0) target = $region5
    $region4: #{iomatch_forward.1} parent=1 // pred_region
      _
    $region5: #{iomatch_forward.1} parent=1 // pred_fallthru
      _
    // Predicated region
    $region6: #{iomatch_forward.1} parent=1 // pred_check
      _
    $region7: #{iomatch_forward.1} parent=1 // pred_check_branch
      %19 = sbr.rel (0) target = $region9
    $region8: #{iomatch_forward.1} parent=1 // pred_region
      %21 = vsyncadd [#allocation3], 0
      %s22 = sshll.u32 %s1, 4
      %s23 = int_to_ptr.hbm [resolvable:$true] %s22
      %s24 = sshll.u32 [#allocation2], 4
      %s25 = int_to_ptr.vmem [resolvable:$true] %s24
      %30 = dma.hbm_to_vmem [thread:$0]  %s23, 8192, %s25, [#allocation3], 64, 64, 4
    $region9: #{iomatch_forward.1} parent=1 // pred_fallthru
      _
    // Predicated region
    $region10: #{iomatch_forward.1} parent=1 // pred_check
      _
    $region11: #{iomatch_forward.1} parent=1 // pred_check_branch
      %32 = sbr.rel (0) target = $region13
    $region12: #{iomatch_forward.1} parent=1 // pred_region
      _
    $region13: #{iomatch_forward.1} parent=1 // pred_fallthru
      _
    // Predicated region
    $region14: #{iomatch_forward.1} parent=1 // pred_check
      _
    $region15: #{iomatch_forward.1} parent=1 // pred_check_branch
      %34 = sbr.rel (0) target = $region17
    $region16: #{iomatch_forward.1} parent=1 // pred_region
      _
    $region17: #{iomatch_forward.1} parent=1 // pred_fallthru
      _
    // Predicated region
    $region18: #{iomatch_forward.1} parent=1 // pred_check
      _
    $region19: #{iomatch_forward.1} parent=1 // pred_check_branch
      %36 = sbr.rel (0) target = $region21
    $region20: #{iomatch_forward.1} parent=1 // pred_region
      _
    $region21: #{iomatch_forward.1} parent=1 // pred_fallthru
      _
    // Predicated region
    $region22: #{iomatch_forward.1} parent=1 // pred_check
      _
    $region23: #{iomatch_forward.1} parent=1 // pred_check_branch
      %38 = sbr.rel (0) target = $region25
    $region24: #{iomatch_forward.1} parent=1 // pred_region
      %40 = vsyncadd [#allocation5], 0
      %s41 = sshll.u32 %s5, 4
      %s42 = int_to_ptr.hbm [resolvable:$true] %s41
      %s43 = sshll.u32 [#allocation4], 4
      %s44 = int_to_ptr.vmem [resolvable:$true] %s43
      %49 = dma.hbm_to_vmem [thread:$0]  %s42, 1024, %s44, [#allocation5], 64, 64, 4
    $region25: #{iomatch_forward.1} parent=1 // pred_fallthru
      _
    // Predicated region
    $region26: #{iomatch_forward.1} parent=1 // pred_check
      _
    $region27: #{iomatch_forward.1} parent=1 // pred_check_branch
      %51 = sbr.rel (0) target = $region29
    $region28: #{iomatch_forward.1} parent=1 // pred_region
      _
    $region29: #{iomatch_forward.1} parent=1 // pred_fallthru
      _
    // Predicated region
    $region30: #{iomatch_forward.1} parent=1 // pred_check
      _
    $region31: #{iomatch_forward.1} parent=1 // pred_check_branch
      %53 = sbr.rel (0) target = $region33
    $region32: #{iomatch_forward.1} parent=1 // pred_region
      %55 = vsyncadd [#allocation5], 0
      %s56 = sshll.u32 %s7, 4
      %s57 = int_to_ptr.hbm [resolvable:$true] %s56
      %s58 = sshll.u32 [#allocation6], 4
      %s59 = int_to_ptr.vmem [resolvable:$true] %s58
      %64 = dma.hbm_to_vmem [thread:$0]  %s57, 2048, %s59, [#allocation5], 128, 128, 8
    $region33: #{iomatch_forward.1} parent=1 // pred_fallthru
      _
    // Predicated region
    $region34: #{iomatch_forward.1} parent=1 // pred_check
      _
    $region35: #{iomatch_forward.1} parent=1 // pred_check_branch
      %66 = sbr.rel (0) target = $region37
    $region36: #{iomatch_forward.1} parent=1 // pred_region
      _
    $region37: #{iomatch_forward.1} parent=1 // pred_fallthru
      _
    // Predicated region
    $region38: #{iomatch_forward.1} parent=1 // pred_check
      _
    $region39: #{iomatch_forward.1} parent=1 // pred_check_branch
      %68 = sbr.rel (0) target = $region41
    $region40: #{iomatch_forward.1} parent=1 // pred_region
      %70 = dma.done [#allocation3], 8192
    $region41: #{iomatch_forward.1} parent=1 // pred_fallthru
      _
    // Predicated region
    $region42: #{iomatch_forward.1} parent=1 // pred_check
      _
    $region43: #{iomatch_forward.1} parent=1 // pred_check_branch
      %72 = sbr.rel (0) target = $region45
    $region44: #{iomatch_forward.1} parent=1 // pred_region
      %74 = dma.done [#allocation5], 1024
    $region45: #{iomatch_forward.1} parent=1 // pred_fallthru
      _
    // Predicated region
    $region46: #{iomatch_forward.1} parent=1 // pred_check
      _
    $region47: #{iomatch_forward.1} parent=1 // pred_check_branch
      %76 = sbr.rel (0) target = $region49
    $region48: #{iomatch_forward.1} parent=1 // pred_region
      %78 = dma.done [#allocation5], 2048
    $region49: #{iomatch_forward.1} parent=1 // pred_fallthru
      _
    %v79 = vld [vmem:[%s0] sm:$0xff]
    %v80 = vld [vmem:[%s0 + $0x8] sm:$0xff]
    %83 = vst [vmem:[#allocation1] ss:$4 sm:$0xff] %v79
    %s84 = scalar_lea.vmem [#allocation1], 32
    %85 = vst [vmem:[%s84] ss:$4 sm:$0xff] %v80
    %v86 = vld.sshfl [vmem:[#allocation1] sm:$0xff pattern:$0x73625140]
    %v87 = vld.sshfl [vmem:[#allocation1 + $0x8] sm:$0xff pattern:$0x73625140]
    %v88 = vld.sshfl [vmem:[#allocation1 + $0x10] sm:$0xff pattern:$0x73625140]
    %v89 = vld.sshfl [vmem:[#allocation1 + $0x18] sm:$0xff pattern:$0x73625140]
    %v90 = vld.sshfl [vmem:[#allocation1 + $0x20] sm:$0xff pattern:$0x73625140]
    %v91 = vld.sshfl [vmem:[#allocation1 + $0x28] sm:$0xff pattern:$0x73625140]
    %v92 = vld.sshfl [vmem:[#allocation1 + $0x30] sm:$0xff pattern:$0x73625140]
    %v93 = vld.sshfl [vmem:[#allocation1 + $0x38] sm:$0xff pattern:$0x73625140]
    %v102 = vpack.c.bf16 %v86, %v86
    %v103 = vpack.c.bf16 %v87, %v87
    %v104 = vpack.c.bf16 %v88, %v88
    %v105 = vpack.c.bf16 %v89, %v89
    %v106 = vpack.c.bf16 %v90, %v90
    %v107 = vpack.c.bf16 %v91, %v91
    %v108 = vpack.c.bf16 %v92, %v92
    %v109 = vpack.c.bf16 %v93, %v93
    %v110 = vld [vmem:[#allocation2] sm:$0xf]
    %v111 = vld [vmem:[#allocation2 + $0x4] sm:$0xf]
    %v112 = vld [vmem:[#allocation2 + $0x8] sm:$0xf]
    %v113 = vld [vmem:[#allocation2 + $0xc] sm:$0xf]
    %v114 = vld [vmem:[#allocation2 + $0x10] sm:$0xf]
    %v115 = vld [vmem:[#allocation2 + $0x14] sm:$0xf]
    %v116 = vld [vmem:[#allocation2 + $0x18] sm:$0xf]
    %v117 = vld [vmem:[#allocation2 + $0x1c] sm:$0xf]
    %v118 = vld [vmem:[#allocation2 + $0x20] sm:$0xf]
    %v119 = vld [vmem:[#allocation2 + $0x24] sm:$0xf]
    %v120 = vld [vmem:[#allocation2 + $0x28] sm:$0xf]
    %v121 = vld [vmem:[#allocation2 + $0x2c] sm:$0xf]
    %v122 = vld [vmem:[#allocation2 + $0x30] sm:$0xf]
    %v123 = vld [vmem:[#allocation2 + $0x34] sm:$0xf]
    %v124 = vld [vmem:[#allocation2 + $0x38] sm:$0xf]
    %v125 = vld [vmem:[#allocation2 + $0x3c] sm:$0xf]
    %v126 = vld [vmem:[#allocation2 + $0x40] sm:$0xf]
    %v127 = vld [vmem:[#allocation2 + $0x44] sm:$0xf]
    %v128 = vld [vmem:[#allocation2 + $0x48] sm:$0xf]
    %v129 = vld [vmem:[#allocation2 + $0x4c] sm:$0xf]
    %v130 = vld [vmem:[#allocation2 + $0x50] sm:$0xf]
    %v131 = vld [vmem:[#allocation2 + $0x54] sm:$0xf]
    %v132 = vld [vmem:[#allocation2 + $0x58] sm:$0xf]
    %v133 = vld [vmem:[#allocation2 + $0x5c] sm:$0xf]
    %v134 = vld [vmem:[#allocation2 + $0x60] sm:$0xf]
    %v135 = vld [vmem:[#allocation2 + $0x64] sm:$0xf]
    %v136 = vld [vmem:[#allocation2 + $0x68] sm:$0xf]
    %v137 = vld [vmem:[#allocation2 + $0x6c] sm:$0xf]
    %v138 = vld [vmem:[#allocation2 + $0x70] sm:$0xf]
    %v139 = vld [vmem:[#allocation2 + $0x74] sm:$0xf]
    %v140 = vld [vmem:[#allocation2 + $0x78] sm:$0xf]
    %v141 = vld [vmem:[#allocation2 + $0x7c] sm:$0xf]
    %v142 = vld [vmem:[#allocation2 + $0x80] sm:$0xf]
    %v143 = vld [vmem:[#allocation2 + $0x84] sm:$0xf]
    %v144 = vld [vmem:[#allocation2 + $0x88] sm:$0xf]
    %v145 = vld [vmem:[#allocation2 + $0x8c] sm:$0xf]
    %v146 = vld [vmem:[#allocation2 + $0x90] sm:$0xf]
    %v147 = vld [vmem:[#allocation2 + $0x94] sm:$0xf]
    %v148 = vld [vmem:[#allocation2 + $0x98] sm:$0xf]
    %v149 = vld [vmem:[#allocation2 + $0x9c] sm:$0xf]
    %v150 = vld [vmem:[#allocation2 + $0xa0] sm:$0xf]
    %v151 = vld [vmem:[#allocation2 + $0xa4] sm:$0xf]
    %v152 = vld [vmem:[#allocation2 + $0xa8] sm:$0xf]
    %v153 = vld [vmem:[#allocation2 + $0xac] sm:$0xf]
    %v154 = vld [vmem:[#allocation2 + $0xb0] sm:$0xf]
    %v155 = vld [vmem:[#allocation2 + $0xb4] sm:$0xf]
    %v156 = vld [vmem:[#allocation2 + $0xb8] sm:$0xf]
    %v157 = vld [vmem:[#allocation2 + $0xbc] sm:$0xf]
    %v158 = vld [vmem:[#allocation2 + $0xc0] sm:$0xf]
    %v159 = vld [vmem:[#allocation2 + $0xc4] sm:$0xf]
    %v160 = vld [vmem:[#allocation2 + $0xc8] sm:$0xf]
    %v161 = vld [vmem:[#allocation2 + $0xcc] sm:$0xf]
    %v162 = vld [vmem:[#allocation2 + $0xd0] sm:$0xf]
    %v163 = vld [vmem:[#allocation2 + $0xd4] sm:$0xf]
    %v164 = vld [vmem:[#allocation2 + $0xd8] sm:$0xf]
    %v165 = vld [vmem:[#allocation2 + $0xdc] sm:$0xf]
    %v166 = vld [vmem:[#allocation2 + $0xe0] sm:$0xf]
    %v167 = vld [vmem:[#allocation2 + $0xe4] sm:$0xf]
    %v168 = vld [vmem:[#allocation2 + $0xe8] sm:$0xf]
    %v169 = vld [vmem:[#allocation2 + $0xec] sm:$0xf]
    %v170 = vld [vmem:[#allocation2 + $0xf0] sm:$0xf]
    %v171 = vld [vmem:[#allocation2 + $0xf4] sm:$0xf]
    %v172 = vld [vmem:[#allocation2 + $0xf8] sm:$0xf]
    %v173 = vld [vmem:[#allocation2 + $0xfc] sm:$0xf]
    %v174 = vld [vmem:[#allocation2 + $0x100] sm:$0xf]
    %v175 = vld [vmem:[#allocation2 + $0x104] sm:$0xf]
    %v176 = vld [vmem:[#allocation2 + $0x108] sm:$0xf]
    %v177 = vld [vmem:[#allocation2 + $0x10c] sm:$0xf]
    %v178 = vld [vmem:[#allocation2 + $0x110] sm:$0xf]
    %v179 = vld [vmem:[#allocation2 + $0x114] sm:$0xf]
    %v180 = vld [vmem:[#allocation2 + $0x118] sm:$0xf]
    %v181 = vld [vmem:[#allocation2 + $0x11c] sm:$0xf]
    %v182 = vld [vmem:[#allocation2 + $0x120] sm:$0xf]
    %v183 = vld [vmem:[#allocation2 + $0x124] sm:$0xf]
    %v184 = vld [vmem:[#allocation2 + $0x128] sm:$0xf]
    %v185 = vld [vmem:[#allocation2 + $0x12c] sm:$0xf]
    %v186 = vld [vmem:[#allocation2 + $0x130] sm:$0xf]
    %v187 = vld [vmem:[#allocation2 + $0x134] sm:$0xf]
    %v188 = vld [vmem:[#allocation2 + $0x138] sm:$0xf]
    %v189 = vld [vmem:[#allocation2 + $0x13c] sm:$0xf]
    %v190 = vld [vmem:[#allocation2 + $0x140] sm:$0xf]
    %v191 = vld [vmem:[#allocation2 + $0x144] sm:$0xf]
    %v192 = vld [vmem:[#allocation2 + $0x148] sm:$0xf]
    %v193 = vld [vmem:[#allocation2 + $0x14c] sm:$0xf]
    %v194 = vld [vmem:[#allocation2 + $0x150] sm:$0xf]
    %v195 = vld [vmem:[#allocation2 + $0x154] sm:$0xf]
    %v196 = vld [vmem:[#allocation2 + $0x158] sm:$0xf]
    %v197 = vld [vmem:[#allocation2 + $0x15c] sm:$0xf]
    %v198 = vld [vmem:[#allocation2 + $0x160] sm:$0xf]
    %v199 = vld [vmem:[#allocation2 + $0x164] sm:$0xf]
    %v200 = vld [vmem:[#allocation2 + $0x168] sm:$0xf]
    %v201 = vld [vmem:[#allocation2 + $0x16c] sm:$0xf]
    %v202 = vld [vmem:[#allocation2 + $0x170] sm:$0xf]
    %v203 = vld [vmem:[#allocation2 + $0x174] sm:$0xf]
    %v204 = vld [vmem:[#allocation2 + $0x178] sm:$0xf]
    %v205 = vld [vmem:[#allocation2 + $0x17c] sm:$0xf]
    %v206 = vld [vmem:[#allocation2 + $0x180] sm:$0xf]
    %v207 = vld [vmem:[#allocation2 + $0x184] sm:$0xf]
    %v208 = vld [vmem:[#allocation2 + $0x188] sm:$0xf]
    %v209 = vld [vmem:[#allocation2 + $0x18c] sm:$0xf]
    %v210 = vld [vmem:[#allocation2 + $0x190] sm:$0xf]
    %v211 = vld [vmem:[#allocation2 + $0x194] sm:$0xf]
    %v212 = vld [vmem:[#allocation2 + $0x198] sm:$0xf]
    %v213 = vld [vmem:[#allocation2 + $0x19c] sm:$0xf]
    %v214 = vld [vmem:[#allocation2 + $0x1a0] sm:$0xf]
    %v215 = vld [vmem:[#allocation2 + $0x1a4] sm:$0xf]
    %v216 = vld [vmem:[#allocation2 + $0x1a8] sm:$0xf]
    %v217 = vld [vmem:[#allocation2 + $0x1ac] sm:$0xf]
    %v218 = vld [vmem:[#allocation2 + $0x1b0] sm:$0xf]
    %v219 = vld [vmem:[#allocation2 + $0x1b4] sm:$0xf]
    %v220 = vld [vmem:[#allocation2 + $0x1b8] sm:$0xf]
    %v221 = vld [vmem:[#allocation2 + $0x1bc] sm:$0xf]
    %v222 = vld [vmem:[#allocation2 + $0x1c0] sm:$0xf]
    %v223 = vld [vmem:[#allocation2 + $0x1c4] sm:$0xf]
    %v224 = vld [vmem:[#allocation2 + $0x1c8] sm:$0xf]
    %v225 = vld [vmem:[#allocation2 + $0x1cc] sm:$0xf]
    %v226 = vld [vmem:[#allocation2 + $0x1d0] sm:$0xf]
    %v227 = vld [vmem:[#allocation2 + $0x1d4] sm:$0xf]
    %v228 = vld [vmem:[#allocation2 + $0x1d8] sm:$0xf]
    %v229 = vld [vmem:[#allocation2 + $0x1dc] sm:$0xf]
    %v230 = vld [vmem:[#allocation2 + $0x1e0] sm:$0xf]
    %v231 = vld [vmem:[#allocation2 + $0x1e4] sm:$0xf]
    %v232 = vld [vmem:[#allocation2 + $0x1e8] sm:$0xf]
    %v233 = vld [vmem:[#allocation2 + $0x1ec] sm:$0xf]
    %v234 = vld [vmem:[#allocation2 + $0x1f0] sm:$0xf]
    %v235 = vld [vmem:[#allocation2 + $0x1f4] sm:$0xf]
    %v236 = vld [vmem:[#allocation2 + $0x1f8] sm:$0xf]
    %v237 = vld [vmem:[#allocation2 + $0x1fc] sm:$0xf]
    %v238 = vld [vmem:[%s2] sm:$0x1]
    %v240 = vperm.slane %v238, 0
    %v370 = vunpack.c.l.b16 %v110
    %v371 = vunpack.c.l.b16 %v111
    %v372 = vunpack.c.l.b16 %v112
    %v373 = vunpack.c.l.b16 %v113
    %v374 = vunpack.c.l.b16 %v114
    %v375 = vunpack.c.l.b16 %v115
    %v376 = vunpack.c.l.b16 %v116
    %v377 = vunpack.c.l.b16 %v117
    %v378 = vunpack.c.l.b16 %v118
    %v379 = vunpack.c.l.b16 %v119
    %v380 = vunpack.c.l.b16 %v120
    %v381 = vunpack.c.l.b16 %v121
    %v382 = vunpack.c.l.b16 %v122
    %v383 = vunpack.c.l.b16 %v123
    %v384 = vunpack.c.l.b16 %v124
    %v385 = vunpack.c.l.b16 %v125
    %v386 = vunpack.c.l.b16 %v126
    %v387 = vunpack.c.l.b16 %v127
    %v388 = vunpack.c.l.b16 %v128
    %v389 = vunpack.c.l.b16 %v129
    %v390 = vunpack.c.l.b16 %v130
    %v391 = vunpack.c.l.b16 %v131
    %v392 = vunpack.c.l.b16 %v132
    %v393 = vunpack.c.l.b16 %v133
    %v394 = vunpack.c.l.b16 %v134
    %v395 = vunpack.c.l.b16 %v135
    %v396 = vunpack.c.l.b16 %v136
    %v397 = vunpack.c.l.b16 %v137
    %v398 = vunpack.c.l.b16 %v138
    %v399 = vunpack.c.l.b16 %v139
    %v400 = vunpack.c.l.b16 %v140
    %v401 = vunpack.c.l.b16 %v141
    %v402 = vunpack.c.l.b16 %v142
    %v403 = vunpack.c.l.b16 %v143
    %v404 = vunpack.c.l.b16 %v144
    %v405 = vunpack.c.l.b16 %v145
    %v406 = vunpack.c.l.b16 %v146
    %v407 = vunpack.c.l.b16 %v147
    %v408 = vunpack.c.l.b16 %v148
    %v409 = vunpack.c.l.b16 %v149
    %v410 = vunpack.c.l.b16 %v150
    %v411 = vunpack.c.l.b16 %v151
    %v412 = vunpack.c.l.b16 %v152
    %v413 = vunpack.c.l.b16 %v153
    %v414 = vunpack.c.l.b16 %v154
    %v415 = vunpack.c.l.b16 %v155
    %v416 = vunpack.c.l.b16 %v156
    %v417 = vunpack.c.l.b16 %v157
    %v418 = vunpack.c.l.b16 %v158
    %v419 = vunpack.c.l.b16 %v159
    %v420 = vunpack.c.l.b16 %v160
    %v421 = vunpack.c.l.b16 %v161
    %v422 = vunpack.c.l.b16 %v162
    %v423 = vunpack.c.l.b16 %v163
    %v424 = vunpack.c.l.b16 %v164
    %v425 = vunpack.c.l.b16 %v165
    %v426 = vunpack.c.l.b16 %v166
    %v427 = vunpack.c.l.b16 %v167
    %v428 = vunpack.c.l.b16 %v168
    %v429 = vunpack.c.l.b16 %v169
    %v430 = vunpack.c.l.b16 %v170
    %v431 = vunpack.c.l.b16 %v171
    %v432 = vunpack.c.l.b16 %v172
    %v433 = vunpack.c.l.b16 %v173
    %v434 = vunpack.c.l.b16 %v174
    %v435 = vunpack.c.l.b16 %v175
    %v436 = vunpack.c.l.b16 %v176
    %v437 = vunpack.c.l.b16 %v177
    %v438 = vunpack.c.l.b16 %v178
    %v439 = vunpack.c.l.b16 %v179
    %v440 = vunpack.c.l.b16 %v180
    %v441 = vunpack.c.l.b16 %v181
    %v442 = vunpack.c.l.b16 %v182
    %v443 = vunpack.c.l.b16 %v183
    %v444 = vunpack.c.l.b16 %v184
    %v445 = vunpack.c.l.b16 %v185
    %v446 = vunpack.c.l.b16 %v186
    %v447 = vunpack.c.l.b16 %v187
    %v448 = vunpack.c.l.b16 %v188
    %v449 = vunpack.c.l.b16 %v189
    %v450 = vunpack.c.l.b16 %v190
    %v451 = vunpack.c.l.b16 %v191
    %v452 = vunpack.c.l.b16 %v192
    %v453 = vunpack.c.l.b16 %v193
    %v454 = vunpack.c.l.b16 %v194
    %v455 = vunpack.c.l.b16 %v195
    %v456 = vunpack.c.l.b16 %v196
    %v457 = vunpack.c.l.b16 %v197
    %v458 = vunpack.c.l.b16 %v198
    %v459 = vunpack.c.l.b16 %v199
    %v460 = vunpack.c.l.b16 %v200
    %v461 = vunpack.c.l.b16 %v201
    %v462 = vunpack.c.l.b16 %v202
    %v463 = vunpack.c.l.b16 %v203
    %v464 = vunpack.c.l.b16 %v204
    %v465 = vunpack.c.l.b16 %v205
    %v466 = vunpack.c.l.b16 %v206
    %v467 = vunpack.c.l.b16 %v207
    %v468 = vunpack.c.l.b16 %v208
    %v469 = vunpack.c.l.b16 %v209
    %v470 = vunpack.c.l.b16 %v210
    %v471 = vunpack.c.l.b16 %v211
    %v472 = vunpack.c.l.b16 %v212
    %v473 = vunpack.c.l.b16 %v213
    %v474 = vunpack.c.l.b16 %v214
    %v475 = vunpack.c.l.b16 %v215
    %v476 = vunpack.c.l.b16 %v216
    %v477 = vunpack.c.l.b16 %v217
    %v478 = vunpack.c.l.b16 %v218
    %v479 = vunpack.c.l.b16 %v219
    %v480 = vunpack.c.l.b16 %v220
    %v481 = vunpack.c.l.b16 %v221
    %v482 = vunpack.c.l.b16 %v222
    %v483 = vunpack.c.l.b16 %v223
    %v484 = vunpack.c.l.b16 %v224
    %v485 = vunpack.c.l.b16 %v225
    %v486 = vunpack.c.l.b16 %v226
    %v487 = vunpack.c.l.b16 %v227
    %v488 = vunpack.c.l.b16 %v228
    %v489 = vunpack.c.l.b16 %v229
    %v490 = vunpack.c.l.b16 %v230
    %v491 = vunpack.c.l.b16 %v231
    %v492 = vunpack.c.l.b16 %v232
    %v493 = vunpack.c.l.b16 %v233
    %v494 = vunpack.c.l.b16 %v234
    %v495 = vunpack.c.l.b16 %v235
    %v496 = vunpack.c.l.b16 %v236
    %v497 = vunpack.c.l.b16 %v237
    %v498 = vpack.c.b16 %v371, %v370
    %v499 = vpack.c.b16 %v373, %v372
    %v500 = vpack.c.b16 %v375, %v374
    %v501 = vpack.c.b16 %v377, %v376
    %v502 = vpack.c.b16 %v379, %v378
    %v503 = vpack.c.b16 %v381, %v380
    %v504 = vpack.c.b16 %v383, %v382
    %v505 = vpack.c.b16 %v385, %v384
    %v506 = vpack.c.b16 %v387, %v386
    %v507 = vpack.c.b16 %v389, %v388
    %v508 = vpack.c.b16 %v391, %v390
    %v509 = vpack.c.b16 %v393, %v392
    %v510 = vpack.c.b16 %v395, %v394
    %v511 = vpack.c.b16 %v397, %v396
    %v512 = vpack.c.b16 %v399, %v398
    %v513 = vpack.c.b16 %v401, %v400
    %v514 = vpack.c.b16 %v403, %v402
    %v515 = vpack.c.b16 %v405, %v404
    %v516 = vpack.c.b16 %v407, %v406
    %v517 = vpack.c.b16 %v409, %v408
    %v518 = vpack.c.b16 %v411, %v410
    %v519 = vpack.c.b16 %v413, %v412
    %v520 = vpack.c.b16 %v415, %v414
    %v521 = vpack.c.b16 %v417, %v416
    %v522 = vpack.c.b16 %v419, %v418
    %v523 = vpack.c.b16 %v421, %v420
    %v524 = vpack.c.b16 %v423, %v422
    %v525 = vpack.c.b16 %v425, %v424
    %v526 = vpack.c.b16 %v427, %v426
    %v527 = vpack.c.b16 %v429, %v428
    %v528 = vpack.c.b16 %v431, %v430
    %v529 = vpack.c.b16 %v433, %v432
    %v530 = vpack.c.b16 %v435, %v434
    %v531 = vpack.c.b16 %v437, %v436
    %v532 = vpack.c.b16 %v439, %v438
    %v533 = vpack.c.b16 %v441, %v440
    %v534 = vpack.c.b16 %v443, %v442
    %v535 = vpack.c.b16 %v445, %v444
    %v536 = vpack.c.b16 %v447, %v446
    %v537 = vpack.c.b16 %v449, %v448
    %v538 = vpack.c.b16 %v451, %v450
    %v539 = vpack.c.b16 %v453, %v452
    %v540 = vpack.c.b16 %v455, %v454
    %v541 = vpack.c.b16 %v457, %v456
    %v542 = vpack.c.b16 %v459, %v458
    %v543 = vpack.c.b16 %v461, %v460
    %v544 = vpack.c.b16 %v463, %v462
    %v545 = vpack.c.b16 %v465, %v464
    %v546 = vpack.c.b16 %v467, %v466
    %v547 = vpack.c.b16 %v469, %v468
    %v548 = vpack.c.b16 %v471, %v470
    %v549 = vpack.c.b16 %v473, %v472
    %v550 = vpack.c.b16 %v475, %v474
    %v551 = vpack.c.b16 %v477, %v476
    %v552 = vpack.c.b16 %v479, %v478
    %v553 = vpack.c.b16 %v481, %v480
    %v554 = vpack.c.b16 %v483, %v482
    %v555 = vpack.c.b16 %v485, %v484
    %v556 = vpack.c.b16 %v487, %v486
    %v557 = vpack.c.b16 %v489, %v488
    %v558 = vpack.c.b16 %v491, %v490
    %v559 = vpack.c.b16 %v493, %v492
    %v560 = vpack.c.b16 %v495, %v494
    %v561 = vpack.c.b16 %v497, %v496
    %626 = vmatpush.bf16.msra.mxu0 %v505
    %627 = vmatpush.bf16.msra.mxu0 %v504
    %628 = vmatpush.bf16.msra.mxu0 %v503
    %629 = vmatpush.bf16.msra.mxu0 %v502
    %630 = vmatpush.bf16.msra.mxu0 %v501
    %631 = vmatpush.bf16.msra.mxu0 %v500
    %632 = vmatpush.bf16.msra.mxu0 %v499
    %633 = vmatpush.bf16.msra.mxu0 %v498
    %634 = vmatmul.bf16.gmra.mxu0 %v102
    %v635 = vpop.f32.mrf.mxu0
    %v636 = vadd.f32 %v240, %v635
    %v637 = vpop.f32.mrf.mxu0
    %638 = vdwg.mxu0
    %639 = vmatpush.bf16.msra.mxu0 %v513
    %640 = vmatpush.bf16.msra.mxu0 %v512
    %641 = vmatpush.bf16.msra.mxu0 %v511
    %642 = vmatpush.bf16.msra.mxu0 %v510
    %643 = vmatpush.bf16.msra.mxu0 %v509
    %644 = vmatpush.bf16.msra.mxu0 %v508
    %645 = vmatpush.bf16.msra.mxu0 %v507
    %646 = vmatpush.bf16.msra.mxu0 %v506
    %647 = vmatmul.bf16.gmra.mxu0 %v103
    %v648 = vpop.f32.mrf.mxu0
    %v649 = vadd.f32 %v636, %v648
    %v650 = vpop.f32.mrf.mxu0
    %651 = vdwg.mxu0
    %652 = vmatpush.bf16.msra.mxu0 %v521
    %653 = vmatpush.bf16.msra.mxu0 %v520
    %654 = vmatpush.bf16.msra.mxu0 %v519
    %655 = vmatpush.bf16.msra.mxu0 %v518
    %656 = vmatpush.bf16.msra.mxu0 %v517
    %657 = vmatpush.bf16.msra.mxu0 %v516
    %658 = vmatpush.bf16.msra.mxu0 %v515
    %659 = vmatpush.bf16.msra.mxu0 %v514
    %660 = vmatmul.bf16.gmra.mxu0 %v104
    %v661 = vpop.f32.mrf.mxu0
    %v662 = vadd.f32 %v649, %v661
    %v663 = vpop.f32.mrf.mxu0
    %664 = vdwg.mxu0
    %665 = vmatpush.bf16.msra.mxu0 %v529
    %666 = vmatpush.bf16.msra.mxu0 %v528
    %667 = vmatpush.bf16.msra.mxu0 %v527
    %668 = vmatpush.bf16.msra.mxu0 %v526
    %669 = vmatpush.bf16.msra.mxu0 %v525
    %670 = vmatpush.bf16.msra.mxu0 %v524
    %671 = vmatpush.bf16.msra.mxu0 %v523
    %672 = vmatpush.bf16.msra.mxu0 %v522
    %673 = vmatmul.bf16.gmra.mxu0 %v105
    %v674 = vpop.f32.mrf.mxu0
    %v675 = vadd.f32 %v662, %v674
    %v676 = vpop.f32.mrf.mxu0
    %677 = vdwg.mxu0
    %678 = vmatpush.bf16.msra.mxu0 %v537
    %679 = vmatpush.bf16.msra.mxu0 %v536
    %680 = vmatpush.bf16.msra.mxu0 %v535
    %681 = vmatpush.bf16.msra.mxu0 %v534
    %682 = vmatpush.bf16.msra.mxu0 %v533
    %683 = vmatpush.bf16.msra.mxu0 %v532
    %684 = vmatpush.bf16.msra.mxu0 %v531
    %685 = vmatpush.bf16.msra.mxu0 %v530
    %686 = vmatmul.bf16.gmra.mxu0 %v106
    %v687 = vpop.f32.mrf.mxu0
    %v688 = vadd.f32 %v675, %v687
    %v689 = vpop.f32.mrf.mxu0
    %690 = vdwg.mxu0
    %691 = vmatpush.bf16.msra.mxu0 %v545
    %692 = vmatpush.bf16.msra.mxu0 %v544
    %693 = vmatpush.bf16.msra.mxu0 %v543
    %694 = vmatpush.bf16.msra.mxu0 %v542
    %695 = vmatpush.bf16.msra.mxu0 %v541
    %696 = vmatpush.bf16.msra.mxu0 %v540
    %697 = vmatpush.bf16.msra.mxu0 %v539
    %698 = vmatpush.bf16.msra.mxu0 %v538
    %699 = vmatmul.bf16.gmra.mxu0 %v107
    %v700 = vpop.f32.mrf.mxu0
    %v701 = vadd.f32 %v688, %v700
    %v702 = vpop.f32.mrf.mxu0
    %703 = vdwg.mxu0
    %704 = vmatpush.bf16.msra.mxu0 %v553
    %705 = vmatpush.bf16.msra.mxu0 %v552
    %706 = vmatpush.bf16.msra.mxu0 %v551
    %707 = vmatpush.bf16.msra.mxu0 %v550
    %708 = vmatpush.bf16.msra.mxu0 %v549
    %709 = vmatpush.bf16.msra.mxu0 %v548
    %710 = vmatpush.bf16.msra.mxu0 %v547
    %711 = vmatpush.bf16.msra.mxu0 %v546
    %712 = vmatmul.bf16.gmra.mxu0 %v108
    %v713 = vpop.f32.mrf.mxu0
    %v714 = vadd.f32 %v701, %v713
    %v715 = vpop.f32.mrf.mxu0
    %716 = vdwg.mxu0
    %717 = vmatpush.bf16.msra.mxu0 %v561
    %718 = vmatpush.bf16.msra.mxu0 %v560
    %719 = vmatpush.bf16.msra.mxu0 %v559
    %720 = vmatpush.bf16.msra.mxu0 %v558
    %721 = vmatpush.bf16.msra.mxu0 %v557
    %722 = vmatpush.bf16.msra.mxu0 %v556
    %723 = vmatpush.bf16.msra.mxu0 %v555
    %724 = vmatpush.bf16.msra.mxu0 %v554
    %725 = vmatmul.bf16.gmra.mxu0 %v109
    %v726 = vpop.f32.mrf.mxu0
    %v727 = vadd.f32 %v714, %v726
    %v728 = vpop.f32.mrf.mxu0
    %729 = vdwg.mxu0
    %v730 = vmax.f32 %v727, 0.0
    %731 = vst [vmem:[%s9] sm:$0x3] %v730
    %v732 = vpack.c.bf16 %v730, %v730
    %v733 = vld [vmem:[%s3] sm:$0xff]
    %v734 = vld [vmem:[%s3 + $0x8] sm:$0xff]
    %v735 = vld [vmem:[%s3 + $0x10] sm:$0xff]
    %v736 = vld [vmem:[%s3 + $0x18] sm:$0xff]
    %v737 = vld [vmem:[%s3 + $0x20] sm:$0xff]
    %v738 = vld [vmem:[%s3 + $0x28] sm:$0xff]
    %v739 = vld [vmem:[%s3 + $0x30] sm:$0xff]
    %v740 = vld [vmem:[%s3 + $0x38] sm:$0xff]
    %v741 = vld [vmem:[%s3 + $0x40] sm:$0xff]
    %v742 = vld [vmem:[%s3 + $0x48] sm:$0xff]
    %v743 = vld [vmem:[%s3 + $0x50] sm:$0xff]
    %v744 = vld [vmem:[%s3 + $0x58] sm:$0xff]
    %v745 = vld [vmem:[%s3 + $0x60] sm:$0xff]
    %v746 = vld [vmem:[%s3 + $0x68] sm:$0xff]
    %v747 = vld [vmem:[%s3 + $0x70] sm:$0xff]
    %v748 = vld [vmem:[%s3 + $0x78] sm:$0xff]
    %v749 = vld [vmem:[%s4] sm:$0x3]
    %v751 = vperm.slane %v749, 0
    %v752 = vperm.slane %v749, 1
    %v771 = vunpack.c.l.b16 %v733
    %v772 = vunpack.c.h.b16 %v733
    %v773 = vunpack.c.l.b16 %v734
    %v774 = vunpack.c.h.b16 %v734
    %v775 = vunpack.c.l.b16 %v735
    %v776 = vunpack.c.h.b16 %v735
    %v777 = vunpack.c.l.b16 %v736
    %v778 = vunpack.c.h.b16 %v736
    %v779 = vunpack.c.l.b16 %v737
    %v780 = vunpack.c.h.b16 %v737
    %v781 = vunpack.c.l.b16 %v738
    %v782 = vunpack.c.h.b16 %v738
    %v783 = vunpack.c.l.b16 %v739
    %v784 = vunpack.c.h.b16 %v739
    %v785 = vunpack.c.l.b16 %v740
    %v786 = vunpack.c.h.b16 %v740
    %v787 = vunpack.c.l.b16 %v741
    %v788 = vunpack.c.h.b16 %v741
    %v789 = vunpack.c.l.b16 %v742
    %v790 = vunpack.c.h.b16 %v742
    %v791 = vunpack.c.l.b16 %v743
    %v792 = vunpack.c.h.b16 %v743
    %v793 = vunpack.c.l.b16 %v744
    %v794 = vunpack.c.h.b16 %v744
    %v795 = vunpack.c.l.b16 %v745
    %v796 = vunpack.c.h.b16 %v745
    %v797 = vunpack.c.l.b16 %v746
    %v798 = vunpack.c.h.b16 %v746
    %v799 = vunpack.c.l.b16 %v747
    %v800 = vunpack.c.h.b16 %v747
    %v801 = vunpack.c.l.b16 %v748
    %v802 = vunpack.c.h.b16 %v748
    %v803 = vpack.c.b16 %v773, %v771
    %v804 = vpack.c.b16 %v774, %v772
    %v805 = vpack.c.b16 %v777, %v775
    %v806 = vpack.c.b16 %v778, %v776
    %v807 = vpack.c.b16 %v781, %v779
    %v808 = vpack.c.b16 %v782, %v780
    %v809 = vpack.c.b16 %v785, %v783
    %v810 = vpack.c.b16 %v786, %v784
    %v811 = vpack.c.b16 %v789, %v787
    %v812 = vpack.c.b16 %v790, %v788
    %v813 = vpack.c.b16 %v793, %v791
    %v814 = vpack.c.b16 %v794, %v792
    %v815 = vpack.c.b16 %v797, %v795
    %v816 = vpack.c.b16 %v798, %v796
    %v817 = vpack.c.b16 %v801, %v799
    %v818 = vpack.c.b16 %v802, %v800
    %835 = vmatpush.bf16.msra.mxu0 %v817
    %836 = vmatpush.bf16.msra.mxu0 %v815
    %837 = vmatpush.bf16.msra.mxu0 %v813
    %838 = vmatpush.bf16.msra.mxu0 %v811
    %839 = vmatpush.bf16.msra.mxu0 %v809
    %840 = vmatpush.bf16.msra.mxu0 %v807
    %841 = vmatpush.bf16.msra.mxu0 %v805
    %842 = vmatpush.bf16.msra.mxu0 %v803
    %843 = vmatmul.bf16.gmra.mxu0 %v732
    %v844 = vpop.f32.mrf.mxu0
    %v845 = vadd.f32 %v751, %v844
    %v846 = vpop.f32.mrf.mxu0
    %847 = vdwg.mxu0
    %848 = vmatpush.bf16.msra.mxu0 %v818
    %849 = vmatpush.bf16.msra.mxu0 %v816
    %850 = vmatpush.bf16.msra.mxu0 %v814
    %851 = vmatpush.bf16.msra.mxu0 %v812
    %852 = vmatpush.bf16.msra.mxu0 %v810
    %853 = vmatpush.bf16.msra.mxu0 %v808
    %854 = vmatpush.bf16.msra.mxu0 %v806
    %855 = vmatpush.bf16.msra.mxu0 %v804
    %856 = vmatmul.bf16.gmra.mxu0 %v732
    %v857 = vpop.f32.mrf.mxu0
    %v858 = vadd.f32 %v752, %v857
    %v859 = vpop.f32.mrf.mxu0
    %860 = vdwg.mxu0
    %861 = vst [vmem:[%s9 + $0x2] sm:$0x3] %v858
    %v862 = vmax.f32 %v845, 0.0
    %v863 = vpack.c.bf16 %v862, %v862
    %v864 = vld [vmem:[#allocation4] sm:$0xf]
    %v865 = vld [vmem:[#allocation4 + $0x4] sm:$0xf]
    %v866 = vld [vmem:[#allocation4 + $0x8] sm:$0xf]
    %v867 = vld [vmem:[#allocation4 + $0xc] sm:$0xf]
    %v868 = vld [vmem:[#allocation4 + $0x10] sm:$0xf]
    %v869 = vld [vmem:[#allocation4 + $0x14] sm:$0xf]
    %v870 = vld [vmem:[#allocation4 + $0x18] sm:$0xf]
    %v871 = vld [vmem:[#allocation4 + $0x1c] sm:$0xf]
    %v872 = vld [vmem:[#allocation4 + $0x20] sm:$0xf]
    %v873 = vld [vmem:[#allocation4 + $0x24] sm:$0xf]
    %v874 = vld [vmem:[#allocation4 + $0x28] sm:$0xf]
    %v875 = vld [vmem:[#allocation4 + $0x2c] sm:$0xf]
    %v876 = vld [vmem:[#allocation4 + $0x30] sm:$0xf]
    %v877 = vld [vmem:[#allocation4 + $0x34] sm:$0xf]
    %v878 = vld [vmem:[#allocation4 + $0x38] sm:$0xf]
    %v879 = vld [vmem:[#allocation4 + $0x3c] sm:$0xf]
    %v880 = vld [vmem:[%s6] sm:$0x1]
    %v882 = vperm.slane %v880, 0
    %v900 = vunpack.c.l.b16 %v864
    %v901 = vunpack.c.l.b16 %v865
    %v902 = vunpack.c.l.b16 %v866
    %v903 = vunpack.c.l.b16 %v867
    %v904 = vunpack.c.l.b16 %v868
    %v905 = vunpack.c.l.b16 %v869
    %v906 = vunpack.c.l.b16 %v870
    %v907 = vunpack.c.l.b16 %v871
    %v908 = vunpack.c.l.b16 %v872
    %v909 = vunpack.c.l.b16 %v873
    %v910 = vunpack.c.l.b16 %v874
    %v911 = vunpack.c.l.b16 %v875
    %v912 = vunpack.c.l.b16 %v876
    %v913 = vunpack.c.l.b16 %v877
    %v914 = vunpack.c.l.b16 %v878
    %v915 = vunpack.c.l.b16 %v879
    %v916 = vpack.c.b16 %v901, %v900
    %v917 = vpack.c.b16 %v903, %v902
    %v918 = vpack.c.b16 %v905, %v904
    %v919 = vpack.c.b16 %v907, %v906
    %v920 = vpack.c.b16 %v909, %v908
    %v921 = vpack.c.b16 %v911, %v910
    %v922 = vpack.c.b16 %v913, %v912
    %v923 = vpack.c.b16 %v915, %v914
    %932 = vmatpush.bf16.msra.mxu0 %v923
    %933 = vmatpush.bf16.msra.mxu0 %v922
    %934 = vmatpush.bf16.msra.mxu0 %v921
    %935 = vmatpush.bf16.msra.mxu0 %v920
    %936 = vmatpush.bf16.msra.mxu0 %v919
    %937 = vmatpush.bf16.msra.mxu0 %v918
    %938 = vmatpush.bf16.msra.mxu0 %v917
    %939 = vmatpush.bf16.msra.mxu0 %v916
    %940 = vmatmul.bf16.gmra.mxu0 %v863
    %v941 = vpop.f32.mrf.mxu0
    %v942 = vadd.f32 %v882, %v941
    %v943 = vpop.f32.mrf.mxu0
    %944 = vdwg.mxu0
    %945 = vst [vmem:[%s9 + $0x4] sm:$0x3] %v942
    %v946 = vpack.c.bf16 %v942, %v942
    %v947 = vld [vmem:[#allocation6] sm:$0xff]
    %v948 = vld [vmem:[#allocation6 + $0x8] sm:$0xff]
    %v949 = vld [vmem:[#allocation6 + $0x10] sm:$0xff]
    %v950 = vld [vmem:[#allocation6 + $0x18] sm:$0xff]
    %v951 = vld [vmem:[#allocation6 + $0x20] sm:$0xff]
    %v952 = vld [vmem:[#allocation6 + $0x28] sm:$0xff]
    %v953 = vld [vmem:[#allocation6 + $0x30] sm:$0xff]
    %v954 = vld [vmem:[#allocation6 + $0x38] sm:$0xff]
    %v955 = vld [vmem:[#allocation6 + $0x40] sm:$0xff]
    %v956 = vld [vmem:[#allocation6 + $0x48] sm:$0xff]
    %v957 = vld [vmem:[#allocation6 + $0x50] sm:$0xff]
    %v958 = vld [vmem:[#allocation6 + $0x58] sm:$0xff]
    %v959 = vld [vmem:[#allocation6 + $0x60] sm:$0xff]
    %v960 = vld [vmem:[#allocation6 + $0x68] sm:$0xff]
    %v961 = vld [vmem:[#allocation6 + $0x70] sm:$0xff]
    %v962 = vld [vmem:[#allocation6 + $0x78] sm:$0xff]
    %v963 = vld [vmem:[%s8] sm:$0x3]
    %v965 = vperm.slane %v963, 0
    %v966 = vperm.slane %v963, 1
    %v985 = vunpack.c.l.b16 %v947
    %v986 = vunpack.c.h.b16 %v947
    %v987 = vunpack.c.l.b16 %v948
    %v988 = vunpack.c.h.b16 %v948
    %v989 = vunpack.c.l.b16 %v949
    %v990 = vunpack.c.h.b16 %v949
    %v991 = vunpack.c.l.b16 %v950
    %v992 = vunpack.c.h.b16 %v950
    %v993 = vunpack.c.l.b16 %v951
    %v994 = vunpack.c.h.b16 %v951
    %v995 = vunpack.c.l.b16 %v952
    %v996 = vunpack.c.h.b16 %v952
    %v997 = vunpack.c.l.b16 %v953
    %v998 = vunpack.c.h.b16 %v953
    %v999 = vunpack.c.l.b16 %v954
    %v1000 = vunpack.c.h.b16 %v954
    %v1001 = vunpack.c.l.b16 %v955
    %v1002 = vunpack.c.h.b16 %v955
    %v1003 = vunpack.c.l.b16 %v956
    %v1004 = vunpack.c.h.b16 %v956
    %v1005 = vunpack.c.l.b16 %v957
    %v1006 = vunpack.c.h.b16 %v957
    %v1007 = vunpack.c.l.b16 %v958
    %v1008 = vunpack.c.h.b16 %v958
    %v1009 = vunpack.c.l.b16 %v959
    %v1010 = vunpack.c.h.b16 %v959
    %v1011 = vunpack.c.l.b16 %v960
    %v1012 = vunpack.c.h.b16 %v960
    %v1013 = vunpack.c.l.b16 %v961
    %v1014 = vunpack.c.h.b16 %v961
    %v1015 = vunpack.c.l.b16 %v962
    %v1016 = vunpack.c.h.b16 %v962
    %v1017 = vpack.c.b16 %v987, %v985
    %v1018 = vpack.c.b16 %v988, %v986
    %v1019 = vpack.c.b16 %v991, %v989
    %v1020 = vpack.c.b16 %v992, %v990
    %v1021 = vpack.c.b16 %v995, %v993
    %v1022 = vpack.c.b16 %v996, %v994
    %v1023 = vpack.c.b16 %v999, %v997
    %v1024 = vpack.c.b16 %v1000, %v998
    %v1025 = vpack.c.b16 %v1003, %v1001
    %v1026 = vpack.c.b16 %v1004, %v1002
    %v1027 = vpack.c.b16 %v1007, %v1005
    %v1028 = vpack.c.b16 %v1008, %v1006
    %v1029 = vpack.c.b16 %v1011, %v1009
    %v1030 = vpack.c.b16 %v1012, %v1010
    %v1031 = vpack.c.b16 %v1015, %v1013
    %v1032 = vpack.c.b16 %v1016, %v1014
    %1049 = vmatpush.bf16.msra.mxu0 %v1031
    %1050 = vmatpush.bf16.msra.mxu0 %v1029
    %1051 = vmatpush.bf16.msra.mxu0 %v1027
    %1052 = vmatpush.bf16.msra.mxu0 %v1025
    %1053 = vmatpush.bf16.msra.mxu0 %v1023
    %1054 = vmatpush.bf16.msra.mxu0 %v1021
    %1055 = vmatpush.bf16.msra.mxu0 %v1019
    %1056 = vmatpush.bf16.msra.mxu0 %v1017
    %1057 = vmatmul.bf16.gmra.mxu0 %v946
    %v1058 = vpop.f32.mrf.mxu0
    %v1059 = vadd.f32 %v965, %v1058
    %v1060 = vpop.f32.mrf.mxu0
    %1061 = vdwg.mxu0
    %1062 = vmatpush.bf16.msra.mxu0 %v1032
    %1063 = vmatpush.bf16.msra.mxu0 %v1030
    %1064 = vmatpush.bf16.msra.mxu0 %v1028
    %1065 = vmatpush.bf16.msra.mxu0 %v1026
    %1066 = vmatpush.bf16.msra.mxu0 %v1024
    %1067 = vmatpush.bf16.msra.mxu0 %v1022
    %1068 = vmatpush.bf16.msra.mxu0 %v1020
    %1069 = vmatpush.bf16.msra.mxu0 %v1018
    %1070 = vmatmul.bf16.gmra.mxu0 %v946
    %v1071 = vpop.f32.mrf.mxu0
    %v1072 = vadd.f32 %v966, %v1071
    %v1073 = vpop.f32.mrf.mxu0
    %1074 = vdwg.mxu0
    %v1077 = vrot.slane %v1072, 6
    %vm1078 = vcmask 1041408
    %v1079 = vsel %vm1078, %v1059, %v1077
    %1081 = vst [vmem:[%s9 + $0x6] sm:$0xf] %v1079
    // Predicated region
    $region50: #{iomatch_forward.1} parent=1 // pred_check
      _
    $region51: #{iomatch_forward.1} parent=1 // pred_check_branch
      %1083 = sbr.rel (0) target = $region53
    $region52: #{iomatch_forward.1} parent=1 // pred_region
      _
    $region53: #{iomatch_forward.1} parent=1 // pred_fallthru
      _
    // Predicated region
    $region54: #{iomatch_forward.1} parent=1 // pred_check
      _
    $region55: #{iomatch_forward.1} parent=1 // pred_check_branch
      %1085 = sbr.rel (0) target = $region57
    $region56: #{iomatch_forward.1} parent=1 // pred_region
      _
    $region57: #{iomatch_forward.1} parent=1 // pred_fallthru
      _
    %1086 = vsyncpa [#allocation3], 1
    %1087 = vsyncpa [#allocation5], 1

</llo_original>
